<compile_context>
chip_gen: v7x
topology: tpu7x:2x2x1
jax: 0.10.0
libtpu: 0.0.40
codegen_flags: <defaults>
</compile_context>

<pallas_src>
import jax
import jax.numpy as jnp
from jax.experimental import pallas as pl
from jax.experimental.pallas import tpu as pltpu


def _make_se_kernel(TB, C, HW, chunk):
    num_full = HW // chunk
    rem = HW - num_full * chunk
    inv_hw = 1.0 / float(HW)

    def process_row(tb, x_ref, w1_ref, b1_ref, w2_ref, b2_ref, o_ref):
        # ---- Pass 1: squeeze (global average pool), streamed over lane chunks.
        def sum_chunk(start, size):
            xs = x_ref[tb, :, pl.ds(start, size)].astype(jnp.float32)
            return jnp.sum(xs, axis=-1, keepdims=True)            # (C, 1) fp32

        acc = jnp.zeros((C, 1), dtype=jnp.float32)
        if num_full > 0:
            if num_full <= 8:
                for j in range(num_full):                          # static slices
                    acc = acc + sum_chunk(j * chunk, chunk)
            else:
                def sum_body(j, a):
                    start = pl.multiple_of(j * chunk, chunk)
                    return a + sum_chunk(start, chunk)
                acc = jax.lax.fori_loop(0, num_full, sum_body, acc)
        if rem > 0:
            acc = acc + sum_chunk(num_full * chunk, rem)
        mean = acc * inv_hw                                        # (C, 1) fp32

        # ---- Excitation: fc1 -> ReLU -> fc2 -> sigmoid, once per batch row.
        # Tiny dims: broadcast-multiply + small reductions on VPU/XLU, sigmoid
        # on the EUP; the (C x C//r) dims are far too small to fill the MXU.
        h = jnp.sum(w1_ref[...] * mean, axis=0, keepdims=True) + b1_ref[...]
        h = jnp.maximum(h, 0.0)                                    # (1, Cr)
        s = jnp.sum(w2_ref[...] * h, axis=1, keepdims=True) + b2_ref[...]
        s = jax.nn.sigmoid(s)                                      # (C, 1) fp32

        # ---- Pass 2: scale, streamed over the same chunks (re-read from VMEM).
        def scale_chunk(start, size):
            xs = x_ref[tb, :, pl.ds(start, size)].astype(jnp.float32)
            o_ref[tb, :, pl.ds(start, size)] = (xs * s).astype(o_ref.dtype)

        if num_full > 0:
            if num_full <= 8:
                for j in range(num_full):
                    scale_chunk(j * chunk, chunk)
            else:
                def scale_body(j, c):
                    start = pl.multiple_of(j * chunk, chunk)
                    scale_chunk(start, chunk)
                    return c
                jax.lax.fori_loop(0, num_full, scale_body, 0)
        if rem > 0:
            scale_chunk(num_full * chunk, rem)

    def se_kernel(x_ref, w1_ref, b1_ref, w2_ref, b2_ref, o_ref):
        # x_ref / o_ref: (TB, C, HW) in the I/O dtype (TB batch rows).
        # w1_ref: (C, Cr) == fc1.weight.T (fp32)     b1_ref: (1, Cr)
        # w2_ref: (C, Cr) == fc2.weight   (fp32)     b2_ref: (C, 1)
        if TB <= 4:
            for tb in range(TB):                                   # fully static
                process_row(tb, x_ref, w1_ref, b1_ref, w2_ref, b2_ref, o_ref)
        else:
            def row_body(tb, c):
                process_row(tb, x_ref, w1_ref, b1_ref, w2_ref, b2_ref, o_ref)
                return c
            jax.lax.fori_loop(0, TB, row_body, 0)

    return se_kernel


def se_layer(x, fc1_w, fc1_b, fc2_w, fc2_b):
    """Squeeze-and-Excitation forward.

    x:     (B, C, H, W), fp32 or bf16
    fc1_w: (C//r, C)   fc1_b: (C//r,)    (PyTorch nn.Linear layout)
    fc2_w: (C, C//r)   fc2_b: (C,)
    """
    B, C, H, W = x.shape
    HW = H * W
    Cr = fc1_w.shape[0]

    x3 = x.reshape(B, C, HW)
    w1 = fc1_w.T.astype(jnp.float32)                  # (C, Cr)
    b1 = fc1_b.reshape(1, Cr).astype(jnp.float32)     # (1, Cr)
    w2 = fc2_w.astype(jnp.float32)                    # (C, Cr)
    b2 = fc2_b.reshape(C, 1).astype(jnp.float32)      # (C, 1)

    itemsize = jnp.dtype(x.dtype).itemsize
    row_bytes = C * HW * itemsize

    # ---- Batch tiling: TB rows per grid step.  Target ~512 KiB blocks to
    # amortize per-step overhead; TB must divide B (no partial blocks), and we
    # keep >= 2 grid steps when possible so the batch axis can megacore-split.
    target_block_bytes = 512 * 1024
    tb_cap = max(1, min(B, target_block_bytes // max(row_bytes, 1)))
    divisors = [d for d in range(1, B + 1) if B % d == 0]
    TB = max(d for d in divisors if d <= tb_cap)
    if B >= 2 and B // TB < 2:
        TB = max(d for d in divisors if B // d >= 2)
    n_blocks = B // TB

    # ---- Lane-aligned streaming chunk: multiple of 128, sized so a (C, chunk)
    # fp32 chunk stays around 16 vregs (no spill pressure on vld/vst slots).
    if HW >= 128:
        chunk = max(128, min(HW, ((16 * 1024) // max(C, 1)) // 128 * 128))
    else:
        chunk = HW

    kernel = _make_se_kernel(TB, C, HW, chunk)

    # Per-step VMEM: x block + out block, each double-buffered (+ tiny params).
    block_bytes = TB * row_bytes
    vmem_limit = int(min(128 * 1024 * 1024,
                         max(32 * 1024 * 1024, 4 * block_bytes + 4 * 1024 * 1024)))

    out = pl.pallas_call(
        kernel,
        out_shape=jax.ShapeDtypeStruct((B, C, HW), x.dtype),
        grid=(n_blocks,),
        in_specs=[
            pl.BlockSpec((TB, C, HW), lambda b: (b, 0, 0)),  # x: TB batch rows / step
            pl.BlockSpec((C, Cr), lambda b: (0, 0)),         # fc1 weight (transposed)
            pl.BlockSpec((1, Cr), lambda b: (0, 0)),         # fc1 bias
            pl.BlockSpec((C, Cr), lambda b: (0, 0)),         # fc2 weight
            pl.BlockSpec((C, 1), lambda b: (0, 0)),          # fc2 bias
        ],
        out_specs=pl.BlockSpec((TB, C, HW), lambda b: (b, 0, 0)),
        compiler_params=pltpu.CompilerParams(
            dimension_semantics=("parallel",),   # megacore split over batch blocks
            vmem_limit_bytes=vmem_limit,
        ),
    )(x3, w1, b1, w2, b2)
    return out.reshape(B, C, H, W)


def se_layer_ref(x, fc1_w, fc1_b, fc2_w, fc2_b):
    """Pure-JAX reference of the PyTorch SELayer.forward."""
    y = jnp.mean(x.astype(jnp.float32), axis=(2, 3))
    h = jnp.maximum(y @ fc1_w.T + fc1_b, 0.0)
    s = jax.nn.sigmoid(h @ fc2_w.T + fc2_b)
    return x.astype(jnp.float32) * s[:, :, None, None]


if __name__ == "__main__":
    # SELayer(channel=32, reduction=16) -> hidden = 2; channel > reduction holds.
    B, C, H, W = 2, 32, 16, 16          # H*W = 256 -> lane-dense (multiple of 128)
    reduction = 16
    Cr = C // reduction

    key = jax.random.PRNGKey(0)
    kx, k1, k2, k3, k4 = jax.random.split(key, 5)

    x = jax.random.normal(kx, (B, C, H, W), dtype=jnp.float32)
    fc1_w = jax.random.normal(k1, (Cr, C), dtype=jnp.float32) * 0.1   # PyTorch (out, in)
    fc1_b = jax.random.normal(k2, (Cr,), dtype=jnp.float32) * 0.1
    fc2_w = jax.random.normal(k3, (C, Cr), dtype=jnp.float32) * 0.1
    fc2_b = jax.random.normal(k4, (C,), dtype=jnp.float32) * 0.1

    ref = se_layer_ref(x, fc1_w, fc1_b, fc2_w, fc2_b)

    # fp32 path
    out = jax.block_until_ready(se_layer(x, fc1_w, fc1_b, fc2_w, fc2_b))
    assert out.shape == (B, C, H, W)
    assert jnp.allclose(out, ref, atol=1e-4, rtol=1e-4)

    # bf16 I/O path (bandwidth-bound op -> half the HBM bytes); pooling and the
    # excitation still run in fp32 inside the kernel.
    out_bf16 = jax.block_until_ready(
        se_layer(x.astype(jnp.bfloat16), fc1_w, fc1_b, fc2_w, fc2_b))
    assert out_bf16.dtype == jnp.bfloat16
    assert jnp.allclose(out_bf16.astype(jnp.float32), ref, atol=5e-2, rtol=5e-2)

    print("KERNEL_OK")
</pallas_src>

<mosaic_0001>
module attributes {stable_mosaic.version = 11 : i64} {
  func.func @se_kernel(%arg0: i32, %arg1: memref<1x32x256xf32, #tpu.memory_space<vmem>>, %arg2: memref<32x2xf32, #tpu.memory_space<vmem>>, %arg3: memref<1x2xf32, #tpu.memory_space<vmem>>, %arg4: memref<32x2xf32, #tpu.memory_space<vmem>>, %arg5: memref<32x1xf32, #tpu.memory_space<vmem>>, %arg6: memref<1x32x256xf32, #tpu.memory_space<vmem>>) attributes {dimension_semantics = [#tpu.dimension_semantics<parallel>], iteration_bounds = array<i64: 2>, scalar_prefetch = 0 : i64, scratch_operands = 0 : i64, tpu.core_type = #tpu.core_type<tc>, window_params = [{transform_indices = @transform_0, window_bounds = array<i64: 1, 32, 256>}, {pipeline_mode = #tpu.pipeline_mode<synchronous>, transform_indices = @transform_1, window_bounds = array<i64: 32, 2>}, {pipeline_mode = #tpu.pipeline_mode<synchronous>, transform_indices = @transform_2, window_bounds = array<i64: 1, 2>}, {pipeline_mode = #tpu.pipeline_mode<synchronous>, transform_indices = @transform_3, window_bounds = array<i64: 32, 2>}, {pipeline_mode = #tpu.pipeline_mode<synchronous>, transform_indices = @transform_4, window_bounds = array<i64: 32, 1>}, {transform_indices = @transform_5, window_bounds = array<i64: 1, 32, 256>}]} {
    %cst = arith.constant 0.000000e+00 : f32
    %0 = vector.broadcast %cst : f32 to vector<32x1xf32>
    %c0 = arith.constant 0 : index
    %c0_0 = arith.constant 0 : index
    %c0_1 = arith.constant 0 : index
    %1 = vector.load %arg1[%c0, %c0_0, %c0_1] : memref<1x32x256xf32, #tpu.memory_space<vmem>>, vector<1x32x256xf32>
    %2 = vector.shape_cast %1 : vector<1x32x256xf32> to vector<32x256xf32>
    %cst_2 = arith.constant dense<0.000000e+00> : vector<32xf32>
    %3 = vector.multi_reduction <add>, %2, %cst_2 [1] : vector<32x256xf32> to vector<32xf32>
    %4 = vector.shape_cast %3 : vector<32xf32> to vector<32x1xf32>
    %5 = arith.addf %0, %4 : vector<32x1xf32>
    %cst_3 = arith.constant 3.906250e-03 : f32
    %6 = vector.broadcast %cst_3 : f32 to vector<32x1xf32>
    %7 = arith.mulf %5, %6 : vector<32x1xf32>
    %c0_4 = arith.constant 0 : index
    %c0_5 = arith.constant 0 : index
    %8 = vector.load %arg2[%c0_4, %c0_5] : memref<32x2xf32, #tpu.memory_space<vmem>>, vector<32x2xf32>
    %9 = vector.broadcast %7 : vector<32x1xf32> to vector<32x2xf32>
    %10 = arith.mulf %8, %9 : vector<32x2xf32>
    %cst_6 = arith.constant dense<0.000000e+00> : vector<2xf32>
    %11 = vector.multi_reduction <add>, %10, %cst_6 [0] : vector<32x2xf32> to vector<2xf32>
    %12 = vector.shape_cast %11 : vector<2xf32> to vector<1x2xf32>
    %c0_7 = arith.constant 0 : index
    %c0_8 = arith.constant 0 : index
    %13 = vector.load %arg3[%c0_7, %c0_8] : memref<1x2xf32, #tpu.memory_space<vmem>>, vector<1x2xf32>
    %14 = arith.addf %12, %13 : vector<1x2xf32>
    %cst_9 = arith.constant 0.000000e+00 : f32
    %15 = vector.broadcast %cst_9 : f32 to vector<1x2xf32>
    %16 = arith.maximumf %14, %15 : vector<1x2xf32>
    %c0_10 = arith.constant 0 : index
    %c0_11 = arith.constant 0 : index
    %17 = vector.load %arg4[%c0_10, %c0_11] : memref<32x2xf32, #tpu.memory_space<vmem>>, vector<32x2xf32>
    %18 = vector.broadcast %16 : vector<1x2xf32> to vector<32x2xf32>
    %19 = arith.mulf %17, %18 : vector<32x2xf32>
    %cst_12 = arith.constant dense<0.000000e+00> : vector<32xf32>
    %20 = vector.multi_reduction <add>, %19, %cst_12 [1] : vector<32x2xf32> to vector<32xf32>
    %21 = vector.shape_cast %20 : vector<32xf32> to vector<32x1xf32>
    %c0_13 = arith.constant 0 : index
    %c0_14 = arith.constant 0 : index
    %22 = vector.load %arg5[%c0_13, %c0_14] : memref<32x1xf32, #tpu.memory_space<vmem>>, vector<32x1xf32>
    %23 = arith.addf %21, %22 : vector<32x1xf32>
    %24 = arith.negf %23 : vector<32x1xf32>
    %25 = math.exp %24 : vector<32x1xf32>
    %cst_15 = arith.constant 1.000000e+00 : f32
    %26 = vector.broadcast %cst_15 : f32 to vector<32x1xf32>
    %27 = arith.addf %26, %25 : vector<32x1xf32>
    %28 = arith.divf %26, %27 : vector<32x1xf32>
    %c0_16 = arith.constant 0 : index
    %c0_17 = arith.constant 0 : index
    %c0_18 = arith.constant 0 : index
    %29 = vector.load %arg1[%c0_16, %c0_17, %c0_18] : memref<1x32x256xf32, #tpu.memory_space<vmem>>, vector<1x32x256xf32>
    %30 = vector.shape_cast %29 : vector<1x32x256xf32> to vector<32x256xf32>
    %31 = vector.broadcast %28 : vector<32x1xf32> to vector<32x256xf32>
    %32 = arith.mulf %30, %31 : vector<32x256xf32>
    %c0_19 = arith.constant 0 : index
    %c0_20 = arith.constant 0 : index
    %c0_21 = arith.constant 0 : index
    %33 = vector.load %arg6[%c0_19, %c0_20, %c0_21] : memref<1x32x256xf32, #tpu.memory_space<vmem>>, vector<1x32x256xf32>
    %34 = vector.shape_cast %33 : vector<1x32x256xf32> to vector<32x256xf32>
    %35 = vector.shape_cast %32 : vector<32x256xf32> to vector<1x32x256xf32>
    tpu.vector_store %arg6[%c0_19, %c0_20, %c0_21], %35 {strides = array<i32>} : memref<1x32x256xf32, #tpu.memory_space<vmem>>, vector<1x32x256xf32>,
    return
  }
  func.func @transform_0(%arg0: i32) -> (i32, i32, i32) {
    %c0_i32 = arith.constant 0 : i32
    %c0_i32_0 = arith.constant 0 : i32
    %c0_i32_1 = arith.constant 0 : i32
    return %arg0, %c0_i32, %c0_i32_0 : i32, i32, i32
  }
  func.func @transform_1(%arg0: i32) -> (i32, i32) {
    %c0_i32 = arith.constant 0 : i32
    %c0_i32_0 = arith.constant 0 : i32
    %c0_i32_1 = arith.constant 0 : i32
    return %c0_i32, %c0_i32_0 : i32, i32
  }
  func.func @transform_2(%arg0: i32) -> (i32, i32) {
    %c0_i32 = arith.constant 0 : i32
    %c0_i32_0 = arith.constant 0 : i32
    %c0_i32_1 = arith.constant 0 : i32
    return %c0_i32, %c0_i32_0 : i32, i32
  }
  func.func @transform_3(%arg0: i32) -> (i32, i32) {
    %c0_i32 = arith.constant 0 : i32
    %c0_i32_0 = arith.constant 0 : i32
    %c0_i32_1 = arith.constant 0 : i32
    return %c0_i32, %c0_i32_0 : i32, i32
  }
  func.func @transform_4(%arg0: i32) -> (i32, i32) {
    %c0_i32 = arith.constant 0 : i32
    %c0_i32_0 = arith.constant 0 : i32
    %c0_i32_1 = arith.constant 0 : i32
    return %c0_i32, %c0_i32_0 : i32, i32
  }
  func.func @transform_5(%arg0: i32) -> (i32, i32, i32) {
    %c0_i32 = arith.constant 0 : i32
    %c0_i32_0 = arith.constant 0 : i32
    %c0_i32_1 = arith.constant 0 : i32
    return %arg0, %c0_i32, %c0_i32_0 : i32, i32, i32
  }
}

</mosaic_0001>

<llo_original>
// kernel: tpu_custom_call.1
$region0: #{tpu_custom_call.1}
  #allocation0 [shape = 'u32[]', space=smem, size = 0x4, offset = 0x4, fixed_abs, tag = 'smem constant byte address 0x4 - core index']
  #allocation1 [shape = 'u32[144,128]{1,0:T(1,128)}', space=vmem, size = 0x12000, scoped, tag = 'internal scratch']
  %s0 = inlined_call_operand.hbm [shape: f32[2,32,256], index: 0, kind: input, shape index: {}]
  %s1 = inlined_call_operand.vmem [shape: f32[32,2], index: 1, kind: input, shape index: {}]
  %s2 = inlined_call_operand.vmem [shape: f32[1,2], index: 2, kind: input, shape index: {}]
  %s3 = inlined_call_operand.vmem [shape: f32[32,2], index: 3, kind: input, shape index: {}]
  %s4 = inlined_call_operand.vmem [shape: f32[32,1], index: 4, kind: input, shape index: {}]
  %s5 = inlined_call_operand.hbm [shape: f32[2,32,256], index: 5, kind: output, shape index: {}]
  %s6 = sld [smem:[#allocation0]]
  $region57: #{tpu_custom_call.1} parent=0
    _
  %s8 = ssub.s32 1, %s6
  %s9 = scalar_select 0, %s8, %s6
  $region1: #{tpu_custom_call.1} parent=0
    #allocation2 [shape = 'u8[65536]{0}', space=vmem, size = 0x10000, scoped, tag = 'input window, operand 0']
    #allocation3 [shape = 's32[2]{0}', space=sflag, size = 0x8, scoped, tag = 'scoped memory for tpu_custom_call.1']
    #allocation4 [shape = 's32[2]{0}', space=sflag, size = 0x8, scoped, tag = 'scoped memory for tpu_custom_call.1']
    #allocation5 [shape = 'u8[65536]{0}', space=vmem, size = 0x10000, scoped, tag = 'output window, operand 0']
    %10 = vsyncpa [#allocation3], 0
    %s11 = scalar_lea.sflag [#allocation3], 1
    %12 = vsyncpa %s11, 0
    %13 = vsyncpa [#allocation4], 0
    %s14 = scalar_lea.sflag [#allocation4], 1
    %15 = vsyncpa %s14, 0
    loop: start=0, step=1, limit=4
    $region2: #{tpu_custom_call.1} parent=1 // loop_pre_header
      _
    $region3: #{tpu_custom_call.1} parent=1 // loop_header
      %s17 = sphi 0, %s21
      %p18 = scmp.ge.s32.totalorder %s17, 4
      %s27 = sphi 0, %s29
      %s30 = sphi 0, %s27
      %s31 = sphi 0, %s30
      %s47 = sphi 0, %s31
      %s51 = sphi 0, %s51
      %s53 = sphi 0, %s51
      %s54 = sphi 0, %s53
      %s68 = sphi 0, %s54
      %s72 = sphi 0, %s72
      %s74 = sphi 0, %s72
      %s75 = sphi 0, %s74
      %s89 = sphi 0, %s75
      %s93 = sphi 0, %s93
      %s95 = sphi 0, %s93
      %s96 = sphi 0, %s95
      %s110 = sphi 0, %s96
      %s114 = sphi 0, %s114
      %s116 = sphi 0, %s114
      %s117 = sphi 0, %s116
      %s131 = sphi 0, %s117
      %s137 = sphi 0, %s139
      %s140 = sphi 0, %s137
      %s141 = sphi 0, %s140
      %s157 = sphi 0, %s141
    $region4: #{tpu_custom_call.1} parent=1 // loop_header_branch
      %20 = sbr.rel (%p18) target = $region8
    $region5: #{tpu_custom_call.1} parent=1 // loop_body
      %s22 = ssub.s32 %s17, 1
      %s23 = ssub.s32 %s17, 2
      %s24 = sadd.s32 %s17, 1
      %s25 = ssub.s32 %s17, %s24
      %p26 = scmp.eq.s32.totalorder %s25, 0
      %s28 = sadd.s32 %s27, 1
      %s29 = scalar_select %p26, %s27, %s28
      %p32 = pneg %p26
      %p33 = scmp.eq.s32.totalorder %s17, 1
      %p34 = por %p32, %p33
      %p35 = scmp.ne.s32.totalorder %s27, %s30
      %p36 = scmp.eq.s32.totalorder %s17, 0
      %p37 = por %p35, %p36
      %p38 = scmp.ne.s32.totalorder %s27, %s30
      %p39 = scmp.eq.s32.totalorder %s22, 1
      %p40 = por %p38, %p39
      %p41 = scmp.ne.s32.totalorder %s30, %s31
      %p42 = scmp.eq.s32.totalorder %s22, 0
      %p43 = por %p41, %p42
      %p44 = scmp.ne.s32.totalorder %s30, %s31
      %p45 = scmp.eq.s32.totalorder %s23, 1
      %p46 = por %p44, %p45
      %p48 = scmp.ne.s32.totalorder %s31, %s47
      %p49 = scmp.eq.s32.totalorder %s23, 0
      %p50 = por %p48, %p49
      %s52 = sadd.s32 %s51, 1
      %p55 = scmp.eq.s32.totalorder %s17, 1
      %p56 = scmp.ne.s32.totalorder %s51, %s53
      %p57 = scmp.eq.s32.totalorder %s17, 0
      %p58 = por %p56, %p57
      %p59 = scmp.ne.s32.totalorder %s51, %s53
      %p60 = scmp.eq.s32.totalorder %s22, 1
      %p61 = por %p59, %p60
      %p62 = scmp.ne.s32.totalorder %s53, %s54
      %p63 = scmp.eq.s32.totalorder %s22, 0
      %p64 = por %p62, %p63
      %p65 = scmp.ne.s32.totalorder %s53, %s54
      %p66 = scmp.eq.s32.totalorder %s23, 1
      %p67 = por %p65, %p66
      %p69 = scmp.ne.s32.totalorder %s54, %s68
      %p70 = scmp.eq.s32.totalorder %s23, 0
      %p71 = por %p69, %p70
      %s73 = sadd.s32 %s72, 1
      %p76 = scmp.eq.s32.totalorder %s17, 1
      %p77 = scmp.ne.s32.totalorder %s72, %s74
      %p78 = scmp.eq.s32.totalorder %s17, 0
      %p79 = por %p77, %p78
      %p80 = scmp.ne.s32.totalorder %s72, %s74
      %p81 = scmp.eq.s32.totalorder %s22, 1
      %p82 = por %p80, %p81
      %p83 = scmp.ne.s32.totalorder %s74, %s75
      %p84 = scmp.eq.s32.totalorder %s22, 0
      %p85 = por %p83, %p84
      %p86 = scmp.ne.s32.totalorder %s74, %s75
      %p87 = scmp.eq.s32.totalorder %s23, 1
      %p88 = por %p86, %p87
      %p90 = scmp.ne.s32.totalorder %s75, %s89
      %p91 = scmp.eq.s32.totalorder %s23, 0
      %p92 = por %p90, %p91
      %s94 = sadd.s32 %s93, 1
      %p97 = scmp.eq.s32.totalorder %s17, 1
      %p98 = scmp.ne.s32.totalorder %s93, %s95
      %p99 = scmp.eq.s32.totalorder %s17, 0
      %p100 = por %p98, %p99
      %p101 = scmp.ne.s32.totalorder %s93, %s95
      %p102 = scmp.eq.s32.totalorder %s22, 1
      %p103 = por %p101, %p102
      %p104 = scmp.ne.s32.totalorder %s95, %s96
      %p105 = scmp.eq.s32.totalorder %s22, 0
      %p106 = por %p104, %p105
      %p107 = scmp.ne.s32.totalorder %s95, %s96
      %p108 = scmp.eq.s32.totalorder %s23, 1
      %p109 = por %p107, %p108
      %p111 = scmp.ne.s32.totalorder %s96, %s110
      %p112 = scmp.eq.s32.totalorder %s23, 0
      %p113 = por %p111, %p112
      %s115 = sadd.s32 %s114, 1
      %p118 = scmp.eq.s32.totalorder %s17, 1
      %p119 = scmp.ne.s32.totalorder %s114, %s116
      %p120 = scmp.eq.s32.totalorder %s17, 0
      %p121 = por %p119, %p120
      %p122 = scmp.ne.s32.totalorder %s114, %s116
      %p123 = scmp.eq.s32.totalorder %s22, 1
      %p124 = por %p122, %p123
      %p125 = scmp.ne.s32.totalorder %s116, %s117
      %p126 = scmp.eq.s32.totalorder %s22, 0
      %p127 = por %p125, %p126
      %p128 = scmp.ne.s32.totalorder %s116, %s117
      %p129 = scmp.eq.s32.totalorder %s23, 1
      %p130 = por %p128, %p129
      %p132 = scmp.ne.s32.totalorder %s117, %s131
      %p133 = scmp.eq.s32.totalorder %s23, 0
      %p134 = por %p132, %p133
      %s135 = ssub.s32 %s17, %s24
      %p136 = scmp.eq.s32.totalorder %s135, 0
      %s138 = sadd.s32 %s137, 1
      %s139 = scalar_select %p136, %s137, %s138
      %p142 = pneg %p136
      %p143 = scmp.eq.s32.totalorder %s17, 1
      %p144 = por %p142, %p143
      %p145 = scmp.ne.s32.totalorder %s137, %s140
      %p146 = scmp.eq.s32.totalorder %s17, 0
      %p147 = por %p145, %p146
      %p148 = scmp.ne.s32.totalorder %s137, %s140
      %p149 = scmp.eq.s32.totalorder %s22, 1
      %p150 = por %p148, %p149
      %p151 = scmp.ne.s32.totalorder %s140, %s141
      %p152 = scmp.eq.s32.totalorder %s22, 0
      %p153 = por %p151, %p152
      %p154 = scmp.ne.s32.totalorder %s140, %s141
      %p155 = scmp.eq.s32.totalorder %s23, 1
      %p156 = por %p154, %p155
      %p158 = scmp.ne.s32.totalorder %s141, %s157
      %p159 = scmp.eq.s32.totalorder %s23, 0
      %p160 = por %p158, %p159
      %p161 = scmp.le.s32.totalorder 1, %s17
      %p162 = scmp.lt.s32.totalorder %s17, 3
      %p163 = pnand %p161, %p162
      %p164 = pneg %p163
      // Predicated region
      $region9: #{tpu_custom_call.1} parent=5 // pred_check
        _
      $region10: #{tpu_custom_call.1} parent=5 // pred_check_branch
        %166 = sbr.rel (%p163) target = $region12
      $region11: #{tpu_custom_call.1} parent=5 // pred_region
        %s167 = ssub.s32 %s17, 1
        // Predicated region
        $region13: #{tpu_custom_call.1} parent=11 // pred_check
          %p168 = pneg %p64
        $region14: #{tpu_custom_call.1} parent=11 // pred_check_branch
          %170 = sbr.rel (%p168) target = $region16
        $region15: #{tpu_custom_call.1} parent=11 // pred_region
          _
        $region16: #{tpu_custom_call.1} parent=11 // pred_fallthru
          _
        // Predicated region
        $region17: #{tpu_custom_call.1} parent=11 // pred_check
          %p171 = pneg %p85
        $region18: #{tpu_custom_call.1} parent=11 // pred_check_branch
          %173 = sbr.rel (%p171) target = $region20
        $region19: #{tpu_custom_call.1} parent=11 // pred_region
          _
        $region20: #{tpu_custom_call.1} parent=11 // pred_fallthru
          _
        // Predicated region
        $region21: #{tpu_custom_call.1} parent=11 // pred_check
          %p174 = pneg %p106
        $region22: #{tpu_custom_call.1} parent=11 // pred_check_branch
          %176 = sbr.rel (%p174) target = $region24
        $region23: #{tpu_custom_call.1} parent=11 // pred_region
          _
        $region24: #{tpu_custom_call.1} parent=11 // pred_fallthru
          _
        // Predicated region
        $region25: #{tpu_custom_call.1} parent=11 // pred_check
          %p177 = pneg %p127
        $region26: #{tpu_custom_call.1} parent=11 // pred_check_branch
          %179 = sbr.rel (%p177) target = $region28
        $region27: #{tpu_custom_call.1} parent=11 // pred_region
          _
        $region28: #{tpu_custom_call.1} parent=11 // pred_fallthru
          _
      $region12: #{tpu_custom_call.1} parent=5 // pred_fallthru
        _
      %p180 = scmp.lt.s32.totalorder %s17, 2
      // Predicated region
      $region29: #{tpu_custom_call.1} parent=5 // pred_check
        %p181 = pneg %p180
      $region30: #{tpu_custom_call.1} parent=5 // pred_check_branch
        %183 = sbr.rel (%p181) target = $region32
      $region31: #{tpu_custom_call.1} parent=5 // pred_region
        // Predicated region
        $region33: #{tpu_custom_call.1} parent=31 // pred_check
          %p184 = pneg %p37
        $region34: #{tpu_custom_call.1} parent=31 // pred_check_branch
          %186 = sbr.rel (%p184) target = $region36
        $region35: #{tpu_custom_call.1} parent=31 // pred_region
          %s187 = sand.u32 %s27, 1
          %s188 = scalar_lea.sflag [#allocation3], %s187
          %s189 = sand.u32 %s27, 1
          %s190 = smul.addr %s189, 64
          %s191 = scalar_lea.vmem [#allocation2], %s190
          %s193 = ssub.s32 1024, 1024
          %194 = vsyncadd %s188, %s193
          %s195 = smul.addr %s17, 8
          %s196 = smul.addr %s195, 128
          %s197 = scalar_lea.hbm %s0, %s196
          %s198 = sshll.u32 %s191, 4
          %s199 = int_to_ptr.vmem [resolvable:$true] %s198
          %204 = dma.hbm_to_vmem [thread:$0]  %s197, 1024, %s199, %s188, 256, 256, 16
        $region36: #{tpu_custom_call.1} parent=31 // pred_fallthru
          _
      $region32: #{tpu_custom_call.1} parent=5 // pred_fallthru
        _
      %p205 = scmp.le.s32.totalorder 1, %s17
      %p206 = scmp.lt.s32.totalorder %s17, 3
      %p207 = pnand %p205, %p206
      %p208 = pneg %p207
      // Predicated region
      $region37: #{tpu_custom_call.1} parent=5 // pred_check
        _
      $region38: #{tpu_custom_call.1} parent=5 // pred_check_branch
        %210 = sbr.rel (%p207) target = $region40
      $region39: #{tpu_custom_call.1} parent=5 // pred_region
        %s211 = ssub.s32 %s17, 1
        %s212 = sand.u32 %s30, 1
        %s213 = scalar_lea.sflag [#allocation3], %s212
        %s214 = sand.u32 %s30, 1
        %s215 = smul.addr %s214, 64
        %s216 = scalar_lea.vmem [#allocation2], %s215
        // Predicated region
        $region41: #{tpu_custom_call.1} parent=39 // pred_check
          %p217 = pneg %p43
        $region42: #{tpu_custom_call.1} parent=39 // pred_check_branch
          %219 = sbr.rel (%p217) target = $region44
        $region43: #{tpu_custom_call.1} parent=39 // pred_region
          %220 = dma.done %s213, 1024
        $region44: #{tpu_custom_call.1} parent=39 // pred_fallthru
          _
        %s221 = sand.u32 %s30, 1
        %s222 = scalar_lea.sflag [#allocation3], %s221
        %s223 = sand.u32 %s30, 1
        %s224 = smul.addr %s223, 64
        %s225 = scalar_lea.vmem [#allocation2], %s224
        %p226 = pneg %p43
        %p227 = pneg %p40
        %p228 = pneg %p64
        %p229 = pneg %p61
        %p230 = pneg %p85
        %p231 = pneg %p82
        %p232 = pneg %p106
        %p233 = pneg %p103
        %p234 = pneg %p127
        %p235 = pneg %p124
        %p236 = pneg %p153
        %p237 = pneg %p150
        %s238 = sand.u32 %s140, 1
        %s239 = scalar_lea.sflag [#allocation4], %s238
        %s240 = sand.u32 %s140, 1
        %s241 = smul.addr %s240, 64
        %s242 = scalar_lea.vmem [#allocation5], %s241
        %v243 = vld [vmem:[%s216] sm:$0xff]
        %v244 = vld [vmem:[%s216 + $0x8] sm:$0xff]
        %v245 = vld [vmem:[%s216 + $0x10] sm:$0xff]
        %v246 = vld [vmem:[%s216 + $0x18] sm:$0xff]
        %v247 = vld [vmem:[%s216 + $0x20] sm:$0xff]
        %v248 = vld [vmem:[%s216 + $0x28] sm:$0xff]
        %v249 = vld [vmem:[%s216 + $0x30] sm:$0xff]
        %v250 = vld [vmem:[%s216 + $0x38] sm:$0xff]
        %v251 = vadd.f32 %v243, %v244
        %252 = vadd.xlane.f32.xlu0 %v251
        %v253 = vpop.xlane.xlu0 %252
        %v254 = vadd.f32 %v245, %v246
        %255 = vadd.xlane.f32.xlu0 %v254
        %v256 = vpop.xlane.xlu0 %255
        %v257 = vadd.f32 %v247, %v248
        %258 = vadd.xlane.f32.xlu0 %v257
        %v259 = vpop.xlane.xlu0 %258
        %v260 = vadd.f32 %v249, %v250
        %261 = vadd.xlane.f32.xlu0 %v260
        %v262 = vpop.xlane.xlu0 %261
        %v263 = vadd.f32 %v253, 0.0
        %v264 = vadd.f32 %v256, 0.0
        %v265 = vadd.f32 %v259, 0.0
        %v266 = vadd.f32 %v262, 0.0
        %v267 = vmul.f32 %v263, 0.00390625
        %v268 = vmul.f32 %v264, 0.00390625
        %v269 = vmul.f32 %v265, 0.00390625
        %v270 = vmul.f32 %v266, 0.00390625
        %v271 = vld [vmem:[%s1] sm:$0xff]
        %v272 = vld [vmem:[%s1 + $0x8] sm:$0xff]
        %v273 = vld [vmem:[%s1 + $0x10] sm:$0xff]
        %v274 = vld [vmem:[%s1 + $0x18] sm:$0xff]
        %v275 = vmul.f32 %v271, %v267
        %v276 = vmul.f32 %v272, %v268
        %v277 = vmul.f32 %v273, %v269
        %v278 = vmul.f32 %v274, %v270
        %vm279 = vcmask 15360
        %v280 = vsel %vm279, %v275, 0.0
        %v281 = vsel %vm279, %v276, 0.0
        %v282 = vadd.f32 %v280, %v281
        %v283 = vsel %vm279, %v277, 0.0
        %v284 = vadd.f32 %v282, %v283
        %v285 = vsel %vm279, %v278, 0.0
        %v286 = vadd.f32 %v284, %v285
        %v287 = vrot.slane %v286, 4
        %v288 = vadd.f32 %v286, %v287
        %v289 = vrot.slane %v288, 2
        %v290 = vadd.f32 %v288, %v289
        %v291 = vrot.slane %v290, 1
        %v292 = vadd.f32 %v290, %v291
        %v293 = vld [vmem:[%s2] sm:$0x1]
        %v294 = vadd.f32 %v292, %v293
        %v295 = vmax.f32 %v294, 0.0
        %v296 = vld [vmem:[%s3] sm:$0xff]
        %v297 = vld [vmem:[%s3 + $0x8] sm:$0xff]
        %v298 = vld [vmem:[%s3 + $0x10] sm:$0xff]
        %v299 = vld [vmem:[%s3 + $0x18] sm:$0xff]
        %v300 = vlaneseq
        %v301 = vshrl.u32 %v300, 7
        %v302 = vsub.s32 0, %v301
        %v303 = vrot.slane %v295, %v302
        %v304 = vmul.f32 %v296, %v303
        %v305 = vmul.f32 %v297, %v303
        %v306 = vmul.f32 %v298, %v303
        %v307 = vmul.f32 %v299, %v303
        %v308 = vsel %vm279, %v304, 0.0
        %309 = vadd.xlane.f32.xlu0 %v308
        %v310 = vpop.xlane.xlu0 %309
        %v311 = vsel %vm279, %v305, 0.0
        %312 = vadd.xlane.f32.xlu0 %v311
        %v313 = vpop.xlane.xlu0 %312
        %v314 = vsel %vm279, %v306, 0.0
        %315 = vadd.xlane.f32.xlu0 %v314
        %v316 = vpop.xlane.xlu0 %315
        %v317 = vsel %vm279, %v307, 0.0
        %318 = vadd.xlane.f32.xlu0 %v317
        %v319 = vpop.xlane.xlu0 %318
        %v320 = vld [vmem:[%s4] sm:$0xff]
        %v321 = vld [vmem:[%s4 + $0x8] sm:$0xff]
        %v322 = vld [vmem:[%s4 + $0x10] sm:$0xff]
        %v323 = vld [vmem:[%s4 + $0x18] sm:$0xff]
        %v324 = vadd.f32 %v310, %v320
        %v325 = vadd.f32 %v313, %v321
        %v326 = vadd.f32 %v316, %v322
        %v327 = vadd.f32 %v319, %v323
        %v328 = vxor.u32 %v324, 2147483648
        %v329 = vxor.u32 %v325, 2147483648
        %v330 = vxor.u32 %v326, 2147483648
        %v331 = vxor.u32 %v327, 2147483648
        %v332 = vmul.f32 %v328, 1.442695
        %v333 = vpow.pop %v332
        %v334 = vmul.f32 %v329, 1.442695
        %v335 = vpow.pop %v334
        %v336 = vmul.f32 %v330, 1.442695
        %v337 = vpow.pop %v336
        %v338 = vmul.f32 %v331, 1.442695
        %v339 = vpow.pop %v338
        %v340 = vadd.f32 %v333, 1.0
        %v341 = vadd.f32 %v335, 1.0
        %v342 = vadd.f32 %v337, 1.0
        %v343 = vadd.f32 %v339, 1.0
        %v344 = vrcp.pop %v340
        %v345 = vmul.f32 1.0, %v344
        %v346 = vrcp.pop %v341
        %v347 = vmul.f32 1.0, %v346
        %v348 = vrcp.pop %v342
        %v349 = vmul.f32 1.0, %v348
        %v350 = vrcp.pop %v343
        %v351 = vmul.f32 1.0, %v350
        %353 = vset.pattern.permute.xlu0 0
        %354 = vperm.xlu0 %353, %v345
        %v355 = vpop.permute.xlu0 %354
        %358 = vset.pattern.permute.xlu0 0
        %359 = vperm.xlu0 %358, %v347
        %v360 = vpop.permute.xlu0 %359
        %363 = vset.pattern.permute.xlu0 0
        %364 = vperm.xlu0 %363, %v349
        %v365 = vpop.permute.xlu0 %364
        %368 = vset.pattern.permute.xlu0 0
        %369 = vperm.xlu0 %368, %v351
        %v370 = vpop.permute.xlu0 %369
        %v372 = vmul.f32 %v243, %v355
        %v373 = vmul.f32 %v244, %v355
        %v374 = vmul.f32 %v245, %v360
        %v375 = vmul.f32 %v246, %v360
        %v376 = vmul.f32 %v247, %v365
        %v377 = vmul.f32 %v248, %v365
        %v378 = vmul.f32 %v249, %v370
        %v379 = vmul.f32 %v250, %v370
        %380 = vst [vmem:[%s242] sm:$0xff] %v372
        %381 = vst [vmem:[%s242 + $0x8] sm:$0xff] %v373
        %382 = vst [vmem:[%s242 + $0x10] sm:$0xff] %v374
        %383 = vst [vmem:[%s242 + $0x18] sm:$0xff] %v375
        %384 = vst [vmem:[%s242 + $0x20] sm:$0xff] %v376
        %385 = vst [vmem:[%s242 + $0x28] sm:$0xff] %v377
        %386 = vst [vmem:[%s242 + $0x30] sm:$0xff] %v378
        %387 = vst [vmem:[%s242 + $0x38] sm:$0xff] %v379
        %s388 = sand.u32 %s140, 1
        %s389 = scalar_lea.sflag [#allocation4], %s388
        %s390 = sand.u32 %s140, 1
        %s391 = smul.addr %s390, 64
        %s392 = scalar_lea.vmem [#allocation5], %s391
        // Predicated region
        $region45: #{tpu_custom_call.1} parent=39 // pred_check
          %p393 = pneg %p150
        $region46: #{tpu_custom_call.1} parent=39 // pred_check_branch
          %395 = sbr.rel (%p393) target = $region48
        $region47: #{tpu_custom_call.1} parent=39 // pred_region
          %s397 = ssub.s32 1024, 1024
          %398 = vsyncadd %s389, %s397
          %s399 = smul.addr %s22, 8
          %s400 = smul.addr %s399, 128
          %s401 = scalar_lea.hbm %s5, %s400
          %s402 = sshll.u32 %s392, 4
          %s403 = int_to_ptr.vmem [resolvable:$true] %s402
          %408 = dma.vmem_to_hbm [thread:$0]  %s403, 1024, %s401, %s389, 256, 256, 16
        $region48: #{tpu_custom_call.1} parent=39 // pred_fallthru
          _
      $region40: #{tpu_custom_call.1} parent=5 // pred_fallthru
        _
      %p409 = scmp.le.s32.totalorder 2, %s17
      // Predicated region
      $region49: #{tpu_custom_call.1} parent=5 // pred_check
        %p410 = pneg %p409
      $region50: #{tpu_custom_call.1} parent=5 // pred_check_branch
        %412 = sbr.rel (%p410) target = $region52
      $region51: #{tpu_custom_call.1} parent=5 // pred_region
        %s413 = ssub.s32 %s17, 2
        // Predicated region
        $region53: #{tpu_custom_call.1} parent=51 // pred_check
          %p414 = pneg %p156
        $region54: #{tpu_custom_call.1} parent=51 // pred_check_branch
          %416 = sbr.rel (%p414) target = $region56
        $region55: #{tpu_custom_call.1} parent=51 // pred_region
          %s417 = sand.u32 %s141, 1
          %s418 = scalar_lea.sflag [#allocation4], %s417
          %s419 = sand.u32 %s141, 1
          %s420 = smul.addr %s419, 64
          %s421 = scalar_lea.vmem [#allocation5], %s420
          %422 = dma.done %s418, 1024
        $region56: #{tpu_custom_call.1} parent=51 // pred_fallthru
          _
      $region52: #{tpu_custom_call.1} parent=5 // pred_fallthru
        _
    $region6: #{tpu_custom_call.1} parent=1 // loop_footer
      %s21 = sadd.s32 1, %s17
    $region7: #{tpu_custom_call.1} parent=1 // loop_footer_branch
      %16 = sbr.rel target = $region3
    $region8: #{tpu_custom_call.1} parent=1 // loop_exit
      _
    %423 = vsyncpa [#allocation3], 1
    %s424 = scalar_lea.sflag [#allocation3], 1
    %425 = vsyncpa %s424, 1
    %426 = vsyncpa [#allocation4], 1
    %s427 = scalar_lea.sflag [#allocation4], 1
    %428 = vsyncpa %s427, 1

</llo_original>
